<compile_context>
chip_gen: v7x
topology: tpu7x:2x2x1
jax: 0.10.0
libtpu: 0.0.40
codegen_flags: <defaults>
</compile_context>

<pallas_src>
import jax
import jax.numpy as jnp
from jax.experimental import pallas as pl
from jax.experimental.pallas import tpu as pltpu

# One full f32 vreg: 8 sublanes x 128 lanes.
_TILE = (8, 128)


def _mul_add_kernel(x_ref, w_ref, b_ref, o_ref):
    # Elementwise hot path on a full (8, 128) vreg: y = x * w + b.
    o_ref[...] = x_ref[...] * w_ref[...] + b_ref[...]


def _pad_to_tile(v: jax.Array) -> jax.Array:
    """Embed a short 1-D vector into row 0 of a zero (8, 128) tile."""
    buf = jnp.zeros(_TILE, dtype=v.dtype)
    return buf.at[0, : v.shape[0]].set(v)


def multiple_and_add(x: jax.Array, w: jax.Array, b: jax.Array) -> jax.Array:
    assert x.shape == (3,), "forward expects x of shape (3,)"
    n = x.shape[0]

    # Present a lane-dense, (8,128)-aligned 2-D block to the kernel; the
    # padding lanes compute 0*0+0 = 0 and are discarded on the way out.
    xp = _pad_to_tile(x)
    wp = _pad_to_tile(w)
    bp = _pad_to_tile(b)

    elems = _TILE[0] * _TILE[1]
    out_tile = pl.pallas_call(
        _mul_add_kernel,
        out_shape=jax.ShapeDtypeStruct(_TILE, x.dtype),
        in_specs=[
            pl.BlockSpec(memory_space=pltpu.MemorySpace.VMEM),
            pl.BlockSpec(memory_space=pltpu.MemorySpace.VMEM),
            pl.BlockSpec(memory_space=pltpu.MemorySpace.VMEM),
        ],
        out_specs=pl.BlockSpec(memory_space=pltpu.MemorySpace.VMEM),
        cost_estimate=pl.CostEstimate(
            flops=2 * elems,              # one mul + one add per element
            transcendentals=0,
            bytes_accessed=4 * elems * 4,  # 3 inputs + 1 output, f32
        ),
    )(xp, wp, bp)

    return out_tile[0, :n]


if __name__ == "__main__":
    key = jax.random.PRNGKey(0)
    # Input consistent with the module's assert: shape (3,), float32.
    x = jax.random.normal(key, (3,), dtype=jnp.float32)

    # Parameters initialized deterministically as in the module's __init__:
    # Multiple.w = ones(3), MultipleAndAdd.b = ones(3)
    w = jnp.ones((3,), dtype=jnp.float32)
    b = jnp.ones((3,), dtype=jnp.float32)

    out = multiple_and_add(x, w, b)
    jax.block_until_ready(out)

    ref = x * w + b
    assert out.shape == (3,), out.shape
    assert jnp.allclose(out, ref, atol=1e-6, rtol=1e-6), (out, ref)
    print("KERNEL_OK")
</pallas_src>

<mosaic_0001>
module attributes {stable_mosaic.version = 11 : i64} {
  func.func @_mul_add_kernel(%arg0: memref<8x128xf32, #tpu.memory_space<vmem>>, %arg1: memref<8x128xf32, #tpu.memory_space<vmem>>, %arg2: memref<8x128xf32, #tpu.memory_space<vmem>>, %arg3: memref<8x128xf32, #tpu.memory_space<vmem>>) attributes {dimension_semantics = [], scalar_prefetch = 0 : i64, scratch_operands = 0 : i64, tpu.core_type = #tpu.core_type<tc>} {
    %c0 = arith.constant 0 : index
    %c0_0 = arith.constant 0 : index
    %0 = vector.load %arg0[%c0, %c0_0] : memref<8x128xf32, #tpu.memory_space<vmem>>, vector<8x128xf32>
    %c0_1 = arith.constant 0 : index
    %c0_2 = arith.constant 0 : index
    %1 = vector.load %arg1[%c0_1, %c0_2] : memref<8x128xf32, #tpu.memory_space<vmem>>, vector<8x128xf32>
    %2 = arith.mulf %0, %1 : vector<8x128xf32>
    %c0_3 = arith.constant 0 : index
    %c0_4 = arith.constant 0 : index
    %3 = vector.load %arg2[%c0_3, %c0_4] : memref<8x128xf32, #tpu.memory_space<vmem>>, vector<8x128xf32>
    %4 = arith.addf %2, %3 : vector<8x128xf32>
    %c0_5 = arith.constant 0 : index
    %c0_6 = arith.constant 0 : index
    %5 = vector.load %arg3[%c0_5, %c0_6] : memref<8x128xf32, #tpu.memory_space<vmem>>, vector<8x128xf32>
    tpu.vector_store %arg3[%c0_5, %c0_6], %4 {strides = array<i32>} : memref<8x128xf32, #tpu.memory_space<vmem>>, vector<8x128xf32>,
    return
  }
}

</mosaic_0001>

<llo_original>
// kernel: tpu_custom_call.1
$region0: #{tpu_custom_call.1}
  #allocation0 [shape = 'u32[]', space=smem, size = 0x4, offset = 0x4, fixed_abs, tag = 'smem constant byte address 0x4 - core index']
  #allocation1 [shape = 'u32[144,128]{1,0:T(1,128)}', space=vmem, size = 0x12000, scoped, tag = 'internal scratch']
  %s0 = inlined_call_operand.hbm [shape: f32[8,128], index: 0, kind: input, shape index: {}]
  %s1 = inlined_call_operand.hbm [shape: f32[8,128], index: 1, kind: input, shape index: {}]
  %s2 = inlined_call_operand.hbm [shape: f32[8,128], index: 2, kind: input, shape index: {}]
  %s3 = inlined_call_operand.hbm [shape: f32[8,128], index: 3, kind: output, shape index: {}]
  %s4 = sld [smem:[#allocation0]]
  $region34: #{tpu_custom_call.1} parent=0
    _
  %s6 = ssub.s32 1, %s4
  %s7 = scalar_select 0, %s6, %s4
  $region1: #{tpu_custom_call.1} parent=0
    #allocation2 [shape = 'u8[4096]{0}', space=vmem, size = 0x1000, scoped, tag = 'input window, operand 0, single buffered']
    #allocation3 [shape = 's32[1]{0}', space=sflag, size = 0x4, scoped, tag = 'scoped memory for tpu_custom_call.1']
    #allocation4 [shape = 's32[1]{0}', space=sflag, size = 0x4, scoped, tag = 'scoped memory for tpu_custom_call.1']
    #allocation5 [shape = 'u8[4096]{0}', space=vmem, size = 0x1000, scoped, tag = 'input window, operand 1, single buffered']
    #allocation6 [shape = 's32[1]{0}', space=sflag, size = 0x4, scoped, tag = 'scoped memory for tpu_custom_call.1']
    #allocation7 [shape = 'u8[4096]{0}', space=vmem, size = 0x1000, scoped, tag = 'input window, operand 2, single buffered']
    #allocation8 [shape = 'u8[4096]{0}', space=vmem, size = 0x1000, scoped, tag = 'output window, operand 0, single buffered']
    %8 = vsyncpa [#allocation3], 0
    %9 = vsyncpa [#allocation6], 0
    %10 = vsyncpa [#allocation4], 0
    // Predicated region
    $region2: #{tpu_custom_call.1} parent=1 // pred_check
      _
    $region3: #{tpu_custom_call.1} parent=1 // pred_check_branch
      %12 = sbr.rel (0) target = $region5
    $region4: #{tpu_custom_call.1} parent=1 // pred_region
      %s14 = ssub.s32 128, 128
      %15 = vsyncadd [#allocation3], %s14
      %s17 = sshll.u32 [#allocation2], 4
      %s18 = int_to_ptr.vmem [resolvable:$true] %s17
      %20 = dma.hbm_to_vmem [thread:$0]  %s0, 128, %s18, [#allocation3]
    $region5: #{tpu_custom_call.1} parent=1 // pred_fallthru
      _
    // Predicated region
    $region6: #{tpu_custom_call.1} parent=1 // pred_check
      _
    $region7: #{tpu_custom_call.1} parent=1 // pred_check_branch
      %22 = sbr.rel (0) target = $region9
    $region8: #{tpu_custom_call.1} parent=1 // pred_region
      %s24 = ssub.s32 128, 128
      %25 = vsyncadd [#allocation6], %s24
      %s27 = sshll.u32 [#allocation5], 4
      %s28 = int_to_ptr.vmem [resolvable:$true] %s27
      %30 = dma.hbm_to_vmem [thread:$0]  %s1, 128, %s28, [#allocation6]
    $region9: #{tpu_custom_call.1} parent=1 // pred_fallthru
      _
    // Predicated region
    $region10: #{tpu_custom_call.1} parent=1 // pred_check
      _
    $region11: #{tpu_custom_call.1} parent=1 // pred_check_branch
      %32 = sbr.rel (0) target = $region13
    $region12: #{tpu_custom_call.1} parent=1 // pred_region
      %s34 = ssub.s32 128, 128
      %35 = vsyncadd [#allocation6], %s34
      %s37 = sshll.u32 [#allocation7], 4
      %s38 = int_to_ptr.vmem [resolvable:$true] %s37
      %40 = dma.hbm_to_vmem [thread:$0]  %s2, 128, %s38, [#allocation6]
    $region13: #{tpu_custom_call.1} parent=1 // pred_fallthru
      _
    // Predicated region
    $region14: #{tpu_custom_call.1} parent=1 // pred_check
      _
    $region15: #{tpu_custom_call.1} parent=1 // pred_check_branch
      %42 = sbr.rel (0) target = $region17
    $region16: #{tpu_custom_call.1} parent=1 // pred_region
      %43 = dma.done [#allocation3], 128
    $region17: #{tpu_custom_call.1} parent=1 // pred_fallthru
      _
    // Predicated region
    $region18: #{tpu_custom_call.1} parent=1 // pred_check
      _
    $region19: #{tpu_custom_call.1} parent=1 // pred_check_branch
      %45 = sbr.rel (0) target = $region21
    $region20: #{tpu_custom_call.1} parent=1 // pred_region
      %46 = dma.done [#allocation6], 128
    $region21: #{tpu_custom_call.1} parent=1 // pred_fallthru
      _
    // Predicated region
    $region22: #{tpu_custom_call.1} parent=1 // pred_check
      _
    $region23: #{tpu_custom_call.1} parent=1 // pred_check_branch
      %48 = sbr.rel (0) target = $region25
    $region24: #{tpu_custom_call.1} parent=1 // pred_region
      %49 = dma.done [#allocation6], 128
    $region25: #{tpu_custom_call.1} parent=1 // pred_fallthru
      _
    %v50 = vld [vmem:[#allocation2] sm:$0xff]
    %v51 = vld [vmem:[#allocation5] sm:$0xff]
    %v52 = vmul.f32 %v50, %v51
    %v53 = vld [vmem:[#allocation7] sm:$0xff]
    %v54 = vadd.f32 %v52, %v53
    %55 = vst [vmem:[#allocation8] sm:$0xff] %v54
    // Predicated region
    $region26: #{tpu_custom_call.1} parent=1 // pred_check
      _
    $region27: #{tpu_custom_call.1} parent=1 // pred_check_branch
      %57 = sbr.rel (0) target = $region29
    $region28: #{tpu_custom_call.1} parent=1 // pred_region
      %s59 = ssub.s32 128, 128
      %60 = vsyncadd [#allocation4], %s59
      %s62 = sshll.u32 [#allocation8], 4
      %s63 = int_to_ptr.vmem [resolvable:$true] %s62
      %65 = dma.vmem_to_hbm [thread:$0]  %s63, 128, %s3, [#allocation4]
    $region29: #{tpu_custom_call.1} parent=1 // pred_fallthru
      _
    // Predicated region
    $region30: #{tpu_custom_call.1} parent=1 // pred_check
      _
    $region31: #{tpu_custom_call.1} parent=1 // pred_check_branch
      %67 = sbr.rel (0) target = $region33
    $region32: #{tpu_custom_call.1} parent=1 // pred_region
      %68 = dma.done [#allocation4], 128
    $region33: #{tpu_custom_call.1} parent=1 // pred_fallthru
      _
    %69 = vsyncpa [#allocation3], 1
    %70 = vsyncpa [#allocation6], 1
    %71 = vsyncpa [#allocation4], 1

</llo_original>
